<compile_context>
chip_gen: v7x
topology: tpu7x:2x2x1
jax: 0.10.0
libtpu: 0.0.40
codegen_flags: <defaults>
</compile_context>

<pallas_src>
import jax
import jax.numpy as jnp
from jax.experimental import pallas as pl
from jax.experimental.pallas import tpu as pltpu

# ---- model hyper-params (match the PyTorch __init__ defaults) ----
NUM_STATISTICS = 6
NUM_LIWC_FEATURES = 73
CONTENT_FEATURE_DIM = 10
STATISTICS_FEATURE_DIM = 3
LIWC_FEATURE_DIM = 20
FUSION_OUTPUT_SIZE = 10
NUM_CLASSES = 4
DROPOUT_P = 0          # dropout_p = 0 -> identity at inference

K_PAD = 128            # all matmul operands padded to the 128-lane width

# lane offsets in the packed input x = [content | stat | liwc | 1 | 0...]
_X_C0 = 0
_X_S0 = _X_C0 + CONTENT_FEATURE_DIM               # 10
_X_L0 = _X_S0 + NUM_STATISTICS                    # 16
_X_ONE = _X_L0 + NUM_LIWC_FEATURES                # 89

# lane offsets in hidden-1 = [relu(content) | stat_feat | liwc_feat | 1 | 0...]
_H1_C0 = 0
_H1_S0 = _H1_C0 + CONTENT_FEATURE_DIM             # 10
_H1_L0 = _H1_S0 + STATISTICS_FEATURE_DIM          # 13
_H1_ONE = _H1_L0 + LIWC_FEATURE_DIM               # 33

# lane offsets in hidden-2 = [fused | 1 | 0...]
_H2_ONE = FUSION_OUTPUT_SIZE                      # 10

OUT_WIDTH = 2 * NUM_CLASSES                       # [logits(4) | pred(4)]


def _round_up(x, m):
    return ((x + m - 1) // m) * m


def _choose_batch_tile(b):
    """Pick batch tile size + padded batch."""
    b_r = _round_up(max(b, 1), 8)
    # Large tiles amortize the ~0.35us/step grid overhead; a (4096,128) f32
    # tile is only 2 MiB, so double-buffered activations + the resident
    # 192 KiB weight buffer sit far under the scoped-VMEM default on every
    # generation (incl. v7x's 64 MiB physical VMEM).
    tb = min(4096, b_r)
    # Keep >= 2 grid steps when the batch allows it, so the "parallel" batch
    # axis can be sharded across both TensorCores on v7x.
    if b_r >= 16:
        tb = min(tb, _round_up(pl.cdiv(b_r, 2), 8))
    b_pad = _round_up(b_r, tb)
    return tb, b_pad


# ----------------------------------------------------------------------------
# Kernel
# ----------------------------------------------------------------------------
def content_stat_concat_kernel(x_ref, w_ref, out_ref):
    f32 = jnp.float32
    x = x_ref[...]                                            # (TB, 128)

    # stage 1: one block-diagonal matmul computes relu(content) (identity
    # block), the stat linear (6->3), the liwc linear (73->20) and carries the
    # bias/ones column -- the lane layout IS the torch.cat result.
    h1 = jnp.maximum(jnp.dot(x, w_ref[0], preferred_element_type=f32), 0.0)

    # stage 2: fusion linear (33 -> 10) + ReLU; dropout(p=0) == identity.
    h2 = jnp.maximum(jnp.dot(h1, w_ref[1], preferred_element_type=f32), 0.0)

    # stage 3: final classifier (10 -> 4).
    out_full = jnp.dot(h2, w_ref[2], preferred_element_type=f32)
    logits = out_full[:, :NUM_CLASSES]

    # numerically-stable softmax with EXACT normalization (sums to 1).
    m = jnp.max(logits, axis=-1, keepdims=True)
    e = jnp.exp(logits - m)
    pred = e / jnp.sum(e, axis=-1, keepdims=True)

    # single merged lane-contiguous store: [logits | pred]
    merged = jnp.concatenate([logits, pred], axis=-1)         # (TB, 8)
    out_ref[...] = merged.astype(out_ref.dtype)


# ----------------------------------------------------------------------------
# Wrapper-side packing (layout plumbing, done in plain JAX)
# ----------------------------------------------------------------------------
def pack_inputs(content_logits, content_stat_vec, liwc_count_vec, b_pad):
    """Pack [content | stat | liwc | 1] into one (b_pad, 128) f32 matrix."""
    b = content_logits.shape[0]
    x = jnp.zeros((b_pad, K_PAD), jnp.float32)
    x = x.at[:b, _X_C0:_X_C0 + CONTENT_FEATURE_DIM].set(content_logits)
    x = x.at[:b, _X_S0:_X_S0 + NUM_STATISTICS].set(content_stat_vec)
    x = x.at[:b, _X_L0:_X_L0 + NUM_LIWC_FEATURES].set(liwc_count_vec)
    x = x.at[:b, _X_ONE].set(1.0)                 # bias-carrying ones column
    return x


def pack_weights(params):
    """Fold all 8 weight/bias tensors into one (3, 128, 128) f32 buffer.

    Called ONCE at init time (hoisted off the per-forward path)."""
    # stage 1: block-diagonal [identity(content) | w_stat | w_liwc], biases in
    # the ones row, and a passthrough of the ones column.
    w1 = jnp.zeros((K_PAD, K_PAD), jnp.float32)
    w1 = w1.at[_X_C0:_X_C0 + CONTENT_FEATURE_DIM,
               _H1_C0:_H1_C0 + CONTENT_FEATURE_DIM].set(
                   jnp.eye(CONTENT_FEATURE_DIM, dtype=jnp.float32))
    w1 = w1.at[_X_S0:_X_S0 + NUM_STATISTICS,
               _H1_S0:_H1_S0 + STATISTICS_FEATURE_DIM].set(params["w_stat"])
    w1 = w1.at[_X_L0:_X_L0 + NUM_LIWC_FEATURES,
               _H1_L0:_H1_L0 + LIWC_FEATURE_DIM].set(params["w_liwc"])
    w1 = w1.at[_X_ONE, _H1_S0:_H1_S0 + STATISTICS_FEATURE_DIM].set(
        params["b_stat"].reshape(-1))
    w1 = w1.at[_X_ONE, _H1_L0:_H1_L0 + LIWC_FEATURE_DIM].set(
        params["b_liwc"].reshape(-1))
    w1 = w1.at[_X_ONE, _H1_ONE].set(1.0)

    # stage 2: fusion linear (rows 0..32) + bias row + ones passthrough.
    w2 = jnp.zeros((K_PAD, K_PAD), jnp.float32)
    w2 = w2.at[:_H1_ONE, :FUSION_OUTPUT_SIZE].set(params["w_fusion"])
    w2 = w2.at[_H1_ONE, :FUSION_OUTPUT_SIZE].set(params["b_fusion"].reshape(-1))
    w2 = w2.at[_H1_ONE, _H2_ONE].set(1.0)

    # stage 3: final fc + bias row.
    w3 = jnp.zeros((K_PAD, K_PAD), jnp.float32)
    w3 = w3.at[:FUSION_OUTPUT_SIZE, :NUM_CLASSES].set(params["w_fc"])
    w3 = w3.at[_H2_ONE, :NUM_CLASSES].set(params["b_fc"].reshape(-1))

    return jnp.stack([w1, w2, w3], axis=0)


# ----------------------------------------------------------------------------
# Forward (takes the pre-packed weight buffer)
# ----------------------------------------------------------------------------
def content_stat_concat_forward(content_logits, content_stat_vec,
                                liwc_count_vec, w_packed):
    """Pallas wrapper. Activations float32 [batch, features]; w_packed is the
    (3, 128, 128) buffer produced once by pack_weights()."""
    b = content_logits.shape[0]
    tb, b_pad = _choose_batch_tile(b)
    grid = pl.cdiv(b_pad, tb)

    x = pack_inputs(content_logits, content_stat_vec, liwc_count_vec, b_pad)

    # Advisory cost estimate: count the padded matmuls actually executed.
    flops = 2 * b_pad * K_PAD * K_PAD * 3
    bytes_accessed = x.size * 4 + w_packed.size * 4 + b_pad * OUT_WIDTH * 4

    out = pl.pallas_call(
        content_stat_concat_kernel,
        out_shape=jax.ShapeDtypeStruct((b_pad, OUT_WIDTH), jnp.float32),
        grid_spec=pltpu.PrefetchScalarGridSpec(
            num_scalar_prefetch=0,
            grid=(grid,),
            in_specs=[
                # activations: tiled along batch -> pipelined/double-buffered
                pl.BlockSpec((tb, K_PAD), lambda i: (i, 0)),
                # packed weights: constant block index -> resident in VMEM
                pl.BlockSpec((3, K_PAD, K_PAD), lambda i: (0, 0, 0)),
            ],
            out_specs=pl.BlockSpec((tb, OUT_WIDTH), lambda i: (i, 0)),
        ),
        compiler_params=pltpu.CompilerParams(
            # batch tiles are independent -> megacore-shardable on v7x
            dimension_semantics=("parallel",),
            # let XLA fuse the input-packing producer into the x operand so
            # the packed buffer isn't written to + re-read from HBM.
            allow_input_fusion=[True, False],
        ),
        cost_estimate=pl.CostEstimate(
            flops=flops,
            transcendentals=b_pad * NUM_CLASSES,
            bytes_accessed=bytes_accessed,
        ),
    )(x, w_packed)

    logits = out[:b, :NUM_CLASSES]
    pred = out[:b, NUM_CLASSES:]
    return pred, logits


# ----------------------------------------------------------------------------
# Synthetic params + plain-JAX reference (mirrors the PyTorch forward)
# ----------------------------------------------------------------------------
def init_params(key):
    """PyTorch Linear weight (out,in) stored pre-transposed as (in,out);
    biases stored as (1,out)."""
    ks = jax.random.split(key, 8)
    s = 0.1

    def w(k, shape):
        return (s * jax.random.normal(k, shape)).astype(jnp.float32)

    return {
        "w_stat": w(ks[0], (NUM_STATISTICS, STATISTICS_FEATURE_DIM)),
        "b_stat": w(ks[1], (1, STATISTICS_FEATURE_DIM)),
        "w_liwc": w(ks[2], (NUM_LIWC_FEATURES, LIWC_FEATURE_DIM)),
        "b_liwc": w(ks[3], (1, LIWC_FEATURE_DIM)),
        "w_fusion": w(ks[4], (CONTENT_FEATURE_DIM + STATISTICS_FEATURE_DIM
                              + LIWC_FEATURE_DIM, FUSION_OUTPUT_SIZE)),
        "b_fusion": w(ks[5], (1, FUSION_OUTPUT_SIZE)),
        "w_fc": w(ks[6], (FUSION_OUTPUT_SIZE, NUM_CLASSES)),
        "b_fc": w(ks[7], (1, NUM_CLASSES)),
    }


def reference_forward(content_logits, stat_vec, liwc_vec, params):
    content_feat = jnp.maximum(content_logits, 0.0)
    stat_feat = jnp.maximum(stat_vec @ params["w_stat"] + params["b_stat"], 0.0)
    liwc_feat = jnp.maximum(liwc_vec @ params["w_liwc"] + params["b_liwc"], 0.0)
    combined = jnp.concatenate([content_feat, stat_feat, liwc_feat], axis=1)
    fused = jnp.maximum(combined @ params["w_fusion"] + params["b_fusion"], 0.0)
    logits = fused @ params["w_fc"] + params["b_fc"]
    pred = jax.nn.softmax(logits, axis=-1)
    return pred, logits


if __name__ == "__main__":
    key = jax.random.PRNGKey(0)
    k_in, k_params = jax.random.split(key)
    k_c, k_s, k_l = jax.random.split(k_in, 3)

    B = 8  # small demo batch
    content_logits = jax.random.normal(
        k_c, (B, CONTENT_FEATURE_DIM), dtype=jnp.float32)
    content_stat_vec = jax.random.normal(
        k_s, (B, NUM_STATISTICS), dtype=jnp.float32)
    liwc_count_vec = jax.random.uniform(
        k_l, (B, NUM_LIWC_FEATURES), dtype=jnp.float32) * 5.0

    params = init_params(k_params)
    # hoisted: build the packed weight buffer ONCE, reuse across forwards
    w_packed = pack_weights(params)

    forward = jax.jit(content_stat_concat_forward)
    pred, logits = forward(content_logits, content_stat_vec,
                           liwc_count_vec, w_packed)
    pred = jax.block_until_ready(pred)
    logits = jax.block_until_ready(logits)

    # correctness check vs plain-JAX reference
    pred_ref, logits_ref = reference_forward(
        content_logits, content_stat_vec, liwc_count_vec, params)
    assert jnp.allclose(logits, logits_ref, atol=1e-4, rtol=1e-4), (
        jnp.max(jnp.abs(logits - logits_ref)))
    assert jnp.allclose(pred, pred_ref, atol=1e-4, rtol=1e-4), (
        jnp.max(jnp.abs(pred - pred_ref)))
    assert jnp.allclose(jnp.sum(pred, axis=-1), 1.0, atol=1e-5)

    print("KERNEL_OK")
</pallas_src>

<mosaic_0001>
module attributes {stable_mosaic.version = 11 : i64} {
  func.func @content_stat_concat_kernel(%arg0: i32, %arg1: memref<8x128xf32, #tpu.memory_space<vmem>>, %arg2: memref<3x128x128xf32, #tpu.memory_space<vmem>>, %arg3: memref<8x8xf32, #tpu.memory_space<vmem>>) attributes {dimension_semantics = [#tpu.dimension_semantics<parallel>], iteration_bounds = array<i64: 1>, scalar_prefetch = 0 : i64, scratch_operands = 0 : i64, tpu.core_type = #tpu.core_type<tc>, window_params = [{transform_indices = @transform_0, window_bounds = array<i64: 8, 128>}, {pipeline_mode = #tpu.pipeline_mode<synchronous>, transform_indices = @transform_1, window_bounds = array<i64: 3, 128, 128>}, {transform_indices = @transform_2, window_bounds = array<i64: 8, 8>}]} {
    %c0 = arith.constant 0 : index
    %c0_0 = arith.constant 0 : index
    %0 = vector.load %arg1[%c0, %c0_0] : memref<8x128xf32, #tpu.memory_space<vmem>>, vector<8x128xf32>
    %c0_1 = arith.constant 0 : index
    %c0_2 = arith.constant 0 : index
    %c0_3 = arith.constant 0 : index
    %1 = vector.load %arg2[%c0_1, %c0_2, %c0_3] : memref<3x128x128xf32, #tpu.memory_space<vmem>>, vector<1x128x128xf32>
    %2 = vector.shape_cast %1 : vector<1x128x128xf32> to vector<128x128xf32>
    %cst = arith.constant dense<0.000000e+00> : vector<8x128xf32>
    %3 = tpu.matmul %0, %2, %cst {dimension_numbers = #tpu.dot_dimension_numbers<[1], [0], [0], [1], [0, 0, 1, 1], [], []>} : vector<8x128xf32>, vector<128x128xf32>, vector<8x128xf32> -> vector<8x128xf32>
    %cst_4 = arith.constant 0.000000e+00 : f32
    %4 = vector.broadcast %cst_4 : f32 to vector<8x128xf32>
    %5 = arith.maximumf %3, %4 : vector<8x128xf32>
    %c1 = arith.constant 1 : index
    %c0_5 = arith.constant 0 : index
    %c0_6 = arith.constant 0 : index
    %6 = vector.load %arg2[%c1, %c0_5, %c0_6] : memref<3x128x128xf32, #tpu.memory_space<vmem>>, vector<1x128x128xf32>
    %7 = vector.shape_cast %6 : vector<1x128x128xf32> to vector<128x128xf32>
    %cst_7 = arith.constant dense<0.000000e+00> : vector<8x128xf32>
    %8 = tpu.matmul %5, %7, %cst_7 {dimension_numbers = #tpu.dot_dimension_numbers<[1], [0], [0], [1], [0, 0, 1, 1], [], []>} : vector<8x128xf32>, vector<128x128xf32>, vector<8x128xf32> -> vector<8x128xf32>
    %cst_8 = arith.constant 0.000000e+00 : f32
    %9 = vector.broadcast %cst_8 : f32 to vector<8x128xf32>
    %10 = arith.maximumf %8, %9 : vector<8x128xf32>
    %c2 = arith.constant 2 : index
    %c0_9 = arith.constant 0 : index
    %c0_10 = arith.constant 0 : index
    %11 = vector.load %arg2[%c2, %c0_9, %c0_10] : memref<3x128x128xf32, #tpu.memory_space<vmem>>, vector<1x128x128xf32>
    %12 = vector.shape_cast %11 : vector<1x128x128xf32> to vector<128x128xf32>
    %cst_11 = arith.constant dense<0.000000e+00> : vector<8x128xf32>
    %13 = tpu.matmul %10, %12, %cst_11 {dimension_numbers = #tpu.dot_dimension_numbers<[1], [0], [0], [1], [0, 0, 1, 1], [], []>} : vector<8x128xf32>, vector<128x128xf32>, vector<8x128xf32> -> vector<8x128xf32>
    %14 = vector.extract_strided_slice %13 {offsets = [0, 0], sizes = [8, 4], strides = [1, 1]} : vector<8x128xf32> to vector<8x4xf32>
    %cst_12 = arith.constant dense<0xFF800000> : vector<8xf32>
    %15 = vector.multi_reduction <maximumf>, %14, %cst_12 [1] : vector<8x4xf32> to vector<8xf32>
    %16 = vector.shape_cast %15 : vector<8xf32> to vector<8x1xf32>
    %17 = vector.broadcast %16 : vector<8x1xf32> to vector<8x4xf32>
    %18 = arith.subf %14, %17 : vector<8x4xf32>
    %19 = math.exp %18 : vector<8x4xf32>
    %cst_13 = arith.constant dense<0.000000e+00> : vector<8xf32>
    %20 = vector.multi_reduction <add>, %19, %cst_13 [1] : vector<8x4xf32> to vector<8xf32>
    %21 = vector.shape_cast %20 : vector<8xf32> to vector<8x1xf32>
    %22 = vector.broadcast %21 : vector<8x1xf32> to vector<8x4xf32>
    %23 = arith.divf %19, %22 : vector<8x4xf32>
    %24 = tpu.concatenate %14, %23 in 1 : vector<8x4xf32>, vector<8x4xf32> -> vector<8x8xf32>
    %c0_14 = arith.constant 0 : index
    %c0_15 = arith.constant 0 : index
    %25 = vector.load %arg3[%c0_14, %c0_15] : memref<8x8xf32, #tpu.memory_space<vmem>>, vector<8x8xf32>
    tpu.vector_store %arg3[%c0_14, %c0_15], %24 {strides = array<i32>} : memref<8x8xf32, #tpu.memory_space<vmem>>, vector<8x8xf32>,
    return
  }
  func.func @transform_0(%arg0: i32) -> (i32, i32) {
    %c0_i32 = arith.constant 0 : i32
    %c0_i32_0 = arith.constant 0 : i32
    return %arg0, %c0_i32 : i32, i32
  }
  func.func @transform_1(%arg0: i32) -> (i32, i32, i32) {
    %c0_i32 = arith.constant 0 : i32
    %c0_i32_0 = arith.constant 0 : i32
    %c0_i32_1 = arith.constant 0 : i32
    %c0_i32_2 = arith.constant 0 : i32
    return %c0_i32, %c0_i32_0, %c0_i32_1 : i32, i32, i32
  }
  func.func @transform_2(%arg0: i32) -> (i32, i32) {
    %c0_i32 = arith.constant 0 : i32
    %c0_i32_0 = arith.constant 0 : i32
    return %arg0, %c0_i32 : i32, i32
  }
}

</mosaic_0001>

<llo_original>
// kernel: content_stat_concat_forward.1
$region0: #{content_stat_concat_forward.1}
  #allocation0 [shape = 'u32[]', space=smem, size = 0x4, offset = 0x4, fixed_abs, tag = 'smem constant byte address 0x4 - core index']
  #allocation1 [shape = 'u32[144,128]{1,0:T(1,128)}', space=vmem, size = 0x12000, scoped, tag = 'internal scratch']
  %s0 = inlined_call_operand.vmem [shape: f32[8,128], index: 0, kind: input, shape index: {}]
  %s1 = inlined_call_operand.hbm [shape: f32[3,128,128], index: 1, kind: input, shape index: {}]
  %s2 = inlined_call_operand.vmem [shape: f32[8,8], index: 2, kind: output, shape index: {}]
  %s3 = sld [smem:[#allocation0]]
  $region22: #{content_stat_concat_forward.1} parent=0
    _
  %s5 = ssub.s32 1, %s3
  %s6 = scalar_select 0, %s5, %s3
  $region1: #{content_stat_concat_forward.1} parent=0
    #allocation2 [shape = 'u8[196608]{0}', space=vmem, size = 0x30000, scoped, tag = 'input window, operand 1, single buffered']
    #allocation3 [shape = 's32[1]{0}', space=sflag, size = 0x4, scoped, tag = 'scoped memory for content_stat_concat_forward.1']
    %7 = vsyncpa [#allocation3], 0
    // Predicated region
    $region2: #{content_stat_concat_forward.1} parent=1 // pred_check
      _
    $region3: #{content_stat_concat_forward.1} parent=1 // pred_check_branch
      %9 = sbr.rel (0) target = $region5
    $region4: #{content_stat_concat_forward.1} parent=1 // pred_region
      _
    $region5: #{content_stat_concat_forward.1} parent=1 // pred_fallthru
      _
    // Predicated region
    $region6: #{content_stat_concat_forward.1} parent=1 // pred_check
      _
    $region7: #{content_stat_concat_forward.1} parent=1 // pred_check_branch
      %11 = sbr.rel (0) target = $region9
    $region8: #{content_stat_concat_forward.1} parent=1 // pred_region
      %s13 = ssub.s32 6144, 6144
      %14 = vsyncadd [#allocation3], %s13
      %s15 = sshll.u32 [#allocation2], 4
      %s16 = int_to_ptr.vmem [resolvable:$true] %s15
      %21 = dma.hbm_to_vmem [thread:$0]  %s1, 6144, %s16, [#allocation3], 128, 128, 8
    $region9: #{content_stat_concat_forward.1} parent=1 // pred_fallthru
      _
    // Predicated region
    $region10: #{content_stat_concat_forward.1} parent=1 // pred_check
      _
    $region11: #{content_stat_concat_forward.1} parent=1 // pred_check_branch
      %23 = sbr.rel (0) target = $region13
    $region12: #{content_stat_concat_forward.1} parent=1 // pred_region
      %24 = dma.done [#allocation3], 6144
    $region13: #{content_stat_concat_forward.1} parent=1 // pred_fallthru
      _
    %v25 = vld [vmem:[%s0] sm:$0xff]
    %v26 = vld [vmem:[#allocation2] sm:$0xff]
    %v27 = vld [vmem:[#allocation2 + $0x8] sm:$0xff]
    %v28 = vld [vmem:[#allocation2 + $0x10] sm:$0xff]
    %v29 = vld [vmem:[#allocation2 + $0x18] sm:$0xff]
    %v30 = vld [vmem:[#allocation2 + $0x20] sm:$0xff]
    %v31 = vld [vmem:[#allocation2 + $0x28] sm:$0xff]
    %v32 = vld [vmem:[#allocation2 + $0x30] sm:$0xff]
    %v33 = vld [vmem:[#allocation2 + $0x38] sm:$0xff]
    %v34 = vld [vmem:[#allocation2 + $0x40] sm:$0xff]
    %v35 = vld [vmem:[#allocation2 + $0x48] sm:$0xff]
    %v36 = vld [vmem:[#allocation2 + $0x50] sm:$0xff]
    %v37 = vld [vmem:[#allocation2 + $0x58] sm:$0xff]
    %v38 = vld [vmem:[#allocation2 + $0x60] sm:$0xff]
    %v39 = vld [vmem:[#allocation2 + $0x68] sm:$0xff]
    %v40 = vld [vmem:[#allocation2 + $0x70] sm:$0xff]
    %v41 = vld [vmem:[#allocation2 + $0x78] sm:$0xff]
    %42 = vmatprep.subr.mxu0 0.0
    %43 = vmatpush1.msra.mxu0 %v26
    %44 = vmatprep.subr.mxu0 0.0
    %45 = vmatpush1.msra.mxu0 %v27
    %46 = vmatprep.subr.mxu0 0.0
    %47 = vmatpush1.msra.mxu0 %v28
    %48 = vmatprep.subr.mxu0 0.0
    %49 = vmatpush1.msra.mxu0 %v29
    %50 = vmatprep.subr.mxu0 0.0
    %51 = vmatpush1.msra.mxu0 %v30
    %52 = vmatprep.subr.mxu0 0.0
    %53 = vmatpush1.msra.mxu0 %v31
    %54 = vmatprep.subr.mxu0 0.0
    %55 = vmatpush1.msra.mxu0 %v32
    %56 = vmatprep.subr.mxu0 0.0
    %57 = vmatpush1.msra.mxu0 %v33
    %58 = vmatprep.subr.mxu0 0.0
    %59 = vmatpush1.msra.mxu0 %v34
    %60 = vmatprep.subr.mxu0 0.0
    %61 = vmatpush1.msra.mxu0 %v35
    %62 = vmatprep.subr.mxu0 0.0
    %63 = vmatpush1.msra.mxu0 %v36
    %64 = vmatprep.subr.mxu0 0.0
    %65 = vmatpush1.msra.mxu0 %v37
    %66 = vmatprep.subr.mxu0 0.0
    %67 = vmatpush1.msra.mxu0 %v38
    %68 = vmatprep.subr.mxu0 0.0
    %69 = vmatpush1.msra.mxu0 %v39
    %70 = vmatprep.subr.mxu0 0.0
    %71 = vmatpush1.msra.mxu0 %v40
    %72 = vmatprep.subr.mxu0 0.0
    %73 = vmatpush1.msra.mxu0 %v41
    %74 = vmatprep.subr.mxu0 0.0
    %75 = vmatpush1.msra.mxu0 0.0
    %76 = vmatprep.subr.mxu0 0.0
    %77 = vmatpush1.msra.mxu0 0.0
    %78 = vmatprep.subr.mxu0 0.0
    %79 = vmatpush1.msra.mxu0 0.0
    %80 = vmatprep.subr.mxu0 0.0
    %81 = vmatpush1.msra.mxu0 0.0
    %82 = vmatprep.subr.mxu0 0.0
    %83 = vmatpush1.msra.mxu0 0.0
    %84 = vmatprep.subr.mxu0 0.0
    %85 = vmatpush1.msra.mxu0 0.0
    %86 = vmatprep.subr.mxu0 0.0
    %87 = vmatpush1.msra.mxu0 0.0
    %88 = vmatprep.subr.mxu0 0.0
    %89 = vmatpush1.msra.mxu0 0.0
    %90 = vmatprep.subr.mxu0 0.0
    %91 = vmatpush1.msra.mxu0 0.0
    %92 = vmatprep.subr.mxu0 0.0
    %93 = vmatpush1.msra.mxu0 0.0
    %94 = vmatprep.subr.mxu0 0.0
    %95 = vmatpush1.msra.mxu0 0.0
    %96 = vmatprep.subr.mxu0 0.0
    %97 = vmatpush1.msra.mxu0 0.0
    %98 = vmatprep.subr.mxu0 0.0
    %99 = vmatpush1.msra.mxu0 0.0
    %100 = vmatprep.subr.mxu0 0.0
    %101 = vmatpush1.msra.mxu0 0.0
    %102 = vmatprep.subr.mxu0 0.0
    %103 = vmatpush1.msra.mxu0 0.0
    %104 = vmatprep.subr.mxu0 0.0
    %105 = vmatpush1.msra.mxu0 0.0
    %106 = vmatprep.mubr.f32.mxu0 0.0
    %107 = vmatmul.mubr.f32.gmra.mrb[0].mxu0 %v25
    %v108 = vpop.f32.mrb[0].mxu0
    %v109 = vadd.f32 0.0, %v108
    %v110 = vpop.f32.mrb[0].mxu0
    %111 = vdwg.mxu0
    %v112 = vmax.f32 %v109, 0.0
    %s113 = scalar_lea.vmem [#allocation2], 128
    %v114 = vld [vmem:[%s113] sm:$0xff]
    %v115 = vld [vmem:[%s113 + $0x8] sm:$0xff]
    %v116 = vld [vmem:[%s113 + $0x10] sm:$0xff]
    %v117 = vld [vmem:[%s113 + $0x18] sm:$0xff]
    %v118 = vld [vmem:[%s113 + $0x20] sm:$0xff]
    %v119 = vld [vmem:[%s113 + $0x28] sm:$0xff]
    %v120 = vld [vmem:[%s113 + $0x30] sm:$0xff]
    %v121 = vld [vmem:[%s113 + $0x38] sm:$0xff]
    %v122 = vld [vmem:[%s113 + $0x40] sm:$0xff]
    %v123 = vld [vmem:[%s113 + $0x48] sm:$0xff]
    %v124 = vld [vmem:[%s113 + $0x50] sm:$0xff]
    %v125 = vld [vmem:[%s113 + $0x58] sm:$0xff]
    %v126 = vld [vmem:[%s113 + $0x60] sm:$0xff]
    %v127 = vld [vmem:[%s113 + $0x68] sm:$0xff]
    %v128 = vld [vmem:[%s113 + $0x70] sm:$0xff]
    %v129 = vld [vmem:[%s113 + $0x78] sm:$0xff]
    %130 = vmatprep.subr.mxu0 0.0
    %131 = vmatpush1.msra.mxu0 %v114
    %132 = vmatprep.subr.mxu0 0.0
    %133 = vmatpush1.msra.mxu0 %v115
    %134 = vmatprep.subr.mxu0 0.0
    %135 = vmatpush1.msra.mxu0 %v116
    %136 = vmatprep.subr.mxu0 0.0
    %137 = vmatpush1.msra.mxu0 %v117
    %138 = vmatprep.subr.mxu0 0.0
    %139 = vmatpush1.msra.mxu0 %v118
    %140 = vmatprep.subr.mxu0 0.0
    %141 = vmatpush1.msra.mxu0 %v119
    %142 = vmatprep.subr.mxu0 0.0
    %143 = vmatpush1.msra.mxu0 %v120
    %144 = vmatprep.subr.mxu0 0.0
    %145 = vmatpush1.msra.mxu0 %v121
    %146 = vmatprep.subr.mxu0 0.0
    %147 = vmatpush1.msra.mxu0 %v122
    %148 = vmatprep.subr.mxu0 0.0
    %149 = vmatpush1.msra.mxu0 %v123
    %150 = vmatprep.subr.mxu0 0.0
    %151 = vmatpush1.msra.mxu0 %v124
    %152 = vmatprep.subr.mxu0 0.0
    %153 = vmatpush1.msra.mxu0 %v125
    %154 = vmatprep.subr.mxu0 0.0
    %155 = vmatpush1.msra.mxu0 %v126
    %156 = vmatprep.subr.mxu0 0.0
    %157 = vmatpush1.msra.mxu0 %v127
    %158 = vmatprep.subr.mxu0 0.0
    %159 = vmatpush1.msra.mxu0 %v128
    %160 = vmatprep.subr.mxu0 0.0
    %161 = vmatpush1.msra.mxu0 %v129
    %162 = vmatprep.subr.mxu0 0.0
    %163 = vmatpush1.msra.mxu0 0.0
    %164 = vmatprep.subr.mxu0 0.0
    %165 = vmatpush1.msra.mxu0 0.0
    %166 = vmatprep.subr.mxu0 0.0
    %167 = vmatpush1.msra.mxu0 0.0
    %168 = vmatprep.subr.mxu0 0.0
    %169 = vmatpush1.msra.mxu0 0.0
    %170 = vmatprep.subr.mxu0 0.0
    %171 = vmatpush1.msra.mxu0 0.0
    %172 = vmatprep.subr.mxu0 0.0
    %173 = vmatpush1.msra.mxu0 0.0
    %174 = vmatprep.subr.mxu0 0.0
    %175 = vmatpush1.msra.mxu0 0.0
    %176 = vmatprep.subr.mxu0 0.0
    %177 = vmatpush1.msra.mxu0 0.0
    %178 = vmatprep.subr.mxu0 0.0
    %179 = vmatpush1.msra.mxu0 0.0
    %180 = vmatprep.subr.mxu0 0.0
    %181 = vmatpush1.msra.mxu0 0.0
    %182 = vmatprep.subr.mxu0 0.0
    %183 = vmatpush1.msra.mxu0 0.0
    %184 = vmatprep.subr.mxu0 0.0
    %185 = vmatpush1.msra.mxu0 0.0
    %186 = vmatprep.subr.mxu0 0.0
    %187 = vmatpush1.msra.mxu0 0.0
    %188 = vmatprep.subr.mxu0 0.0
    %189 = vmatpush1.msra.mxu0 0.0
    %190 = vmatprep.subr.mxu0 0.0
    %191 = vmatpush1.msra.mxu0 0.0
    %192 = vmatprep.subr.mxu0 0.0
    %193 = vmatpush1.msra.mxu0 0.0
    %194 = vmatprep.mubr.f32.mxu0 0.0
    %195 = vmatmul.mubr.f32.gmra.mrb[0].mxu0 %v112
    %v196 = vpop.f32.mrb[0].mxu0
    %v197 = vadd.f32 0.0, %v196
    %v198 = vpop.f32.mrb[0].mxu0
    %199 = vdwg.mxu0
    %v200 = vmax.f32 %v197, 0.0
    %s201 = scalar_lea.vmem [#allocation2], 256
    %v202 = vld [vmem:[%s201] sm:$0xff]
    %v203 = vld [vmem:[%s201 + $0x8] sm:$0xff]
    %v204 = vld [vmem:[%s201 + $0x10] sm:$0xff]
    %v205 = vld [vmem:[%s201 + $0x18] sm:$0xff]
    %v206 = vld [vmem:[%s201 + $0x20] sm:$0xff]
    %v207 = vld [vmem:[%s201 + $0x28] sm:$0xff]
    %v208 = vld [vmem:[%s201 + $0x30] sm:$0xff]
    %v209 = vld [vmem:[%s201 + $0x38] sm:$0xff]
    %v210 = vld [vmem:[%s201 + $0x40] sm:$0xff]
    %v211 = vld [vmem:[%s201 + $0x48] sm:$0xff]
    %v212 = vld [vmem:[%s201 + $0x50] sm:$0xff]
    %v213 = vld [vmem:[%s201 + $0x58] sm:$0xff]
    %v214 = vld [vmem:[%s201 + $0x60] sm:$0xff]
    %v215 = vld [vmem:[%s201 + $0x68] sm:$0xff]
    %v216 = vld [vmem:[%s201 + $0x70] sm:$0xff]
    %v217 = vld [vmem:[%s201 + $0x78] sm:$0xff]
    %218 = vmatprep.subr.mxu0 0.0
    %219 = vmatpush1.msra.mxu0 %v202
    %220 = vmatprep.subr.mxu0 0.0
    %221 = vmatpush1.msra.mxu0 %v203
    %222 = vmatprep.subr.mxu0 0.0
    %223 = vmatpush1.msra.mxu0 %v204
    %224 = vmatprep.subr.mxu0 0.0
    %225 = vmatpush1.msra.mxu0 %v205
    %226 = vmatprep.subr.mxu0 0.0
    %227 = vmatpush1.msra.mxu0 %v206
    %228 = vmatprep.subr.mxu0 0.0
    %229 = vmatpush1.msra.mxu0 %v207
    %230 = vmatprep.subr.mxu0 0.0
    %231 = vmatpush1.msra.mxu0 %v208
    %232 = vmatprep.subr.mxu0 0.0
    %233 = vmatpush1.msra.mxu0 %v209
    %234 = vmatprep.subr.mxu0 0.0
    %235 = vmatpush1.msra.mxu0 %v210
    %236 = vmatprep.subr.mxu0 0.0
    %237 = vmatpush1.msra.mxu0 %v211
    %238 = vmatprep.subr.mxu0 0.0
    %239 = vmatpush1.msra.mxu0 %v212
    %240 = vmatprep.subr.mxu0 0.0
    %241 = vmatpush1.msra.mxu0 %v213
    %242 = vmatprep.subr.mxu0 0.0
    %243 = vmatpush1.msra.mxu0 %v214
    %244 = vmatprep.subr.mxu0 0.0
    %245 = vmatpush1.msra.mxu0 %v215
    %246 = vmatprep.subr.mxu0 0.0
    %247 = vmatpush1.msra.mxu0 %v216
    %248 = vmatprep.subr.mxu0 0.0
    %249 = vmatpush1.msra.mxu0 %v217
    %250 = vmatprep.subr.mxu0 0.0
    %251 = vmatpush1.msra.mxu0 0.0
    %252 = vmatprep.subr.mxu0 0.0
    %253 = vmatpush1.msra.mxu0 0.0
    %254 = vmatprep.subr.mxu0 0.0
    %255 = vmatpush1.msra.mxu0 0.0
    %256 = vmatprep.subr.mxu0 0.0
    %257 = vmatpush1.msra.mxu0 0.0
    %258 = vmatprep.subr.mxu0 0.0
    %259 = vmatpush1.msra.mxu0 0.0
    %260 = vmatprep.subr.mxu0 0.0
    %261 = vmatpush1.msra.mxu0 0.0
    %262 = vmatprep.subr.mxu0 0.0
    %263 = vmatpush1.msra.mxu0 0.0
    %264 = vmatprep.subr.mxu0 0.0
    %265 = vmatpush1.msra.mxu0 0.0
    %266 = vmatprep.subr.mxu0 0.0
    %267 = vmatpush1.msra.mxu0 0.0
    %268 = vmatprep.subr.mxu0 0.0
    %269 = vmatpush1.msra.mxu0 0.0
    %270 = vmatprep.subr.mxu0 0.0
    %271 = vmatpush1.msra.mxu0 0.0
    %272 = vmatprep.subr.mxu0 0.0
    %273 = vmatpush1.msra.mxu0 0.0
    %274 = vmatprep.subr.mxu0 0.0
    %275 = vmatpush1.msra.mxu0 0.0
    %276 = vmatprep.subr.mxu0 0.0
    %277 = vmatpush1.msra.mxu0 0.0
    %278 = vmatprep.subr.mxu0 0.0
    %279 = vmatpush1.msra.mxu0 0.0
    %280 = vmatprep.subr.mxu0 0.0
    %281 = vmatpush1.msra.mxu0 0.0
    %282 = vmatprep.mubr.f32.mxu0 0.0
    %283 = vmatmul.mubr.f32.gmra.mrb[0].mxu0 %v200
    %v284 = vpop.f32.mrb[0].mxu0
    %v285 = vadd.f32 0.0, %v284
    %v286 = vpop.f32.mrb[0].mxu0
    %287 = vdwg.mxu0
    %vm288 = vcmask 31744
    %v289 = vsel %vm288, %v285, -inf
    %290 = vmax.xlane.f32.xlu0 %v289
    %v291 = vpop.xlane.xlu0 %290
    %v292 = vsub.f32 %v285, %v291
    %v293 = vmul.f32 %v292, 1.442695
    %v294 = vpow.pop %v293
    %v295 = vsel %vm288, %v294, 0.0
    %296 = vadd.xlane.f32.xlu0 %v295
    %v297 = vpop.xlane.xlu0 %296
    %v298 = vrcp.pop %v297
    %v299 = vmul.f32 %v294, %v298
    %301 = vrot.lane.b32.xlu0 %v299, 4
    %v302 = vpop.permute.xlu0 %301
    %v304 = vsel %vm288, %v285, %v302
    %vm305 = vcmask 64512
    %306 = vst.msk [vmem:[%s2] sm:$0xff] %vm305, %v304
    // Predicated region
    $region14: #{content_stat_concat_forward.1} parent=1 // pred_check
      _
    $region15: #{content_stat_concat_forward.1} parent=1 // pred_check_branch
      %308 = sbr.rel (0) target = $region17
    $region16: #{content_stat_concat_forward.1} parent=1 // pred_region
      _
    $region17: #{content_stat_concat_forward.1} parent=1 // pred_fallthru
      _
    // Predicated region
    $region18: #{content_stat_concat_forward.1} parent=1 // pred_check
      _
    $region19: #{content_stat_concat_forward.1} parent=1 // pred_check_branch
      %310 = sbr.rel (0) target = $region21
    $region20: #{content_stat_concat_forward.1} parent=1 // pred_region
      _
    $region21: #{content_stat_concat_forward.1} parent=1 // pred_fallthru
      _
    %311 = vsyncpa [#allocation3], 1

</llo_original>
